<compile_context>
chip_gen: v5e
topology: v5e:2x2
jax: 0.10.0
libtpu: 0.0.40
codegen_flags: <defaults>
</compile_context>

<pallas_src>
import functools

import jax
import jax.numpy as jnp
from jax.experimental import pallas as pl
from jax.experimental.pallas import tpu as pltpu

LANE = 128            # vreg lane width (last dim)
SUBLANE_BF16 = 16     # bf16 sublane tile (second-to-last dim)
_MAX_BATCH_TILE = 1024
_MAX_HIDDEN_TILE = 512


def _cdiv(a, b):
    return -(-a // b)


def _round_up(x, m):
    return _cdiv(x, m) * m


def _pick_hidden_tile(d_hid_pad, cap=_MAX_HIDDEN_TILE):
    """Largest multiple of 128 that divides d_hid_pad and is <= cap."""
    if d_hid_pad <= cap:
        return d_hid_pad
    best = LANE
    t = LANE
    while t <= cap:
        if d_hid_pad % t == 0:
            best = t
        t += LANE
    return best


def _pick_batch_tile(max_batch, *, cap=_MAX_BATCH_TILE, align=SUBLANE_BF16,
                     min_tiles=1):
    """Padding-aware batch tile (minimizes round_up(B, tb) waste)."""
    b = max(int(max_batch), 1)
    n_tiles = max(_cdiv(b, cap), min_tiles)
    return _round_up(_cdiv(b, n_tiles), align)


# ----------------------------------------------------------------------------
# Kernel: fused Linear -> ReLU -> Linear for one (modality, batch, hidden) block.
# ----------------------------------------------------------------------------
def _mlp_kernel(nt_ref, x_ref, w1_ref, b1_ref, w2_ref, b2_ref, o_ref, acc_ref,
                *, compute_dtype):
    # nt_ref : SMEM (n_modals,) int32 -- number of valid batch tiles / modality
    # x_ref  : (1, TB, D_in_pad)    compute_dtype
    # w1_ref : (1, D_in_pad, TH)    compute_dtype
    # b1_ref : (1, 1, TH)           f32
    # w2_ref : (1, TH, D_out_pad)   compute_dtype
    # b2_ref : (1, 1, D_out_pad)    f32
    # o_ref  : (1, TB, D_out_pad)   out dtype
    # acc_ref: (TB, D_out_pad)      f32 scratch (persists across hidden axis)
    m = pl.program_id(0)
    b = pl.program_id(1)
    h = pl.program_id(2)
    n_h = pl.num_programs(2)
    valid = b < nt_ref[m]

    @pl.when(valid)
    def _():
        @pl.when(h == 0)
        def _():
            acc_ref[...] = jnp.zeros_like(acc_ref)

        # Layer 1 (hidden chunk): MXU matmul with f32 accumulation, bias + ReLU
        # in f32.  ReLU is elementwise over hidden, so per-chunk is exact.
        hid = jnp.dot(x_ref[0], w1_ref[0], preferred_element_type=jnp.float32)
        hid = jnp.maximum(hid + b1_ref[0], 0.0)

        # Layer 2 partial: accumulate this hidden chunk's contribution in f32.
        acc_ref[...] += jnp.dot(hid.astype(compute_dtype), w2_ref[0],
                                preferred_element_type=jnp.float32)

        @pl.when(h == n_h - 1)
        def _():
            o_ref[0] = (acc_ref[...] + b2_ref[0]).astype(o_ref.dtype)

    @pl.when(jnp.logical_and(jnp.logical_not(valid), h == 0))
    def _():
        # Dead (all-padding) batch tile: write zeros once so the block that is
        # DMAed back to HBM is well-defined (it is sliced away outside).
        o_ref[...] = jnp.zeros_like(o_ref)


# ----------------------------------------------------------------------------
# Fused forward over all modalities (single pallas_call).
# ----------------------------------------------------------------------------
@functools.partial(
    jax.jit,
    static_argnames=("dims_in", "batches", "tb", "th", "dim_out", "out_dtype"))
def _encoder_forward_impl(xs, w1, b1, w2, b2, *, dims_in, batches, tb, th,
                          dim_out, out_dtype):
    compute_dtype = w1.dtype
    n_m, d_in_pad, d_hid_pad = w1.shape
    d_out_pad = w2.shape[2]
    b_pad = _round_up(max(batches), tb)
    n_bt = b_pad // tb
    n_h = d_hid_pad // th

    # Pack all modalities into one lane-dense slab, directly in the compute
    # dtype (the cast fuses into the packing copy).  Zero padding -> padded
    # rows/cols contribute exactly 0 to the matmuls.
    x_stack = jnp.zeros((n_m, b_pad, d_in_pad), dtype=compute_dtype)
    for i, (x, d, b) in enumerate(zip(xs, dims_in, batches)):
        x_stack = x_stack.at[i, :b, :d].set(x.astype(compute_dtype))

    # Valid batch-tile count per modality (scalar-prefetched to SMEM so dead
    # all-padding tiles are skipped in-kernel).
    n_tiles = jnp.array([_cdiv(b, tb) for b in batches], dtype=jnp.int32)

    kernel = functools.partial(_mlp_kernel, compute_dtype=compute_dtype)

    # Explicit scoped-VMEM budget sized to the working set (double-buffered
    # inputs/outputs + f32 accumulator + f32 hidden intermediate), with
    # headroom; capped below v7x's 64 MiB physical VMEM.
    itm = jnp.dtype(compute_dtype).itemsize
    otm = jnp.dtype(out_dtype).itemsize
    vmem_bytes = (
        2 * tb * d_in_pad * itm          # x (double-buffered)
        + 2 * d_in_pad * th * itm        # w1 chunk
        + 2 * th * d_out_pad * itm       # w2 chunk
        + 2 * (th + d_out_pad) * 4       # biases (f32)
        + 2 * tb * d_out_pad * otm       # out
        + tb * d_out_pad * 4             # f32 accumulator scratch
        + 2 * tb * th * 4                # f32 hidden intermediate + slack
    )
    vmem_limit = min(max(int(vmem_bytes * 1.25) + (4 << 20), 16 << 20), 64 << 20)

    grid_spec = pltpu.PrefetchScalarGridSpec(
        num_scalar_prefetch=1,
        # modality outer (weights stay resident across batch tiles),
        # hidden-chunk reduction axis last.
        grid=(n_m, n_bt, n_h),
        in_specs=[
            # Batch-tiled activations; dead tiles clamp to the last valid
            # block so no fresh DMA is issued for them.
            pl.BlockSpec((1, tb, d_in_pad),
                         lambda m, b, h, nt: (m, jnp.minimum(b, nt[m] - 1), 0)),
            # Hidden-tiled weights/biases; block index is independent of the
            # batch axis.
            pl.BlockSpec((1, d_in_pad, th), lambda m, b, h, nt: (m, 0, h)),
            pl.BlockSpec((1, 1, th), lambda m, b, h, nt: (m, 0, h)),
            pl.BlockSpec((1, th, d_out_pad), lambda m, b, h, nt: (m, h, 0)),
            pl.BlockSpec((1, 1, d_out_pad), lambda m, b, h, nt: (m, 0, 0)),
        ],
        out_specs=pl.BlockSpec((1, tb, d_out_pad),
                               lambda m, b, h, nt: (m, b, 0)),
        scratch_shapes=[pltpu.VMEM((tb, d_out_pad), jnp.float32)],
    )

    out = pl.pallas_call(
        kernel,
        out_shape=jax.ShapeDtypeStruct((n_m, b_pad, d_out_pad), out_dtype),
        grid_spec=grid_spec,
        compiler_params=pltpu.CompilerParams(
            dimension_semantics=("parallel", "parallel", "arbitrary"),
            vmem_limit_bytes=vmem_limit),
    )(n_tiles, x_stack, w1, b1, w2, b2)

    # Slice away batch / feature padding per modality.
    return tuple(out[i, :b, :dim_out] for i, b in enumerate(batches))


# ----------------------------------------------------------------------------
# Parameter init: stacked, zero-padded, lane-dense weights stored in the MXU
# operand dtype (no in-kernel casts).  Biases stay f32 (bias-add/ReLU in f32).
# PyTorch nn.Linear stores weight as [out, in]; we store transposed [in, out].
# ----------------------------------------------------------------------------
def init_encoder_params(cfg, key, param_dtype=jnp.bfloat16):
    dim_hid = int(cfg["parameters"]["dim_hid"])
    dim_out = int(cfg["parameters"]["dim_out"])
    modals = tuple(cfg["modals"].keys())
    dims_in = tuple(int(cfg["modals"][m]) for m in modals)

    d_in_pad = _round_up(max(dims_in), LANE)
    d_hid_pad = _round_up(dim_hid, LANE)
    d_out_pad = _round_up(dim_out, LANE)

    w1s, b1s, w2s, b2s = [], [], [], []
    for d in dims_in:
        key, k1, k2, k3, k4 = jax.random.split(key, 5)
        w1 = jax.random.normal(k1, (d, dim_hid), jnp.float32) * 0.1
        b1 = jax.random.normal(k2, (dim_hid,), jnp.float32) * 0.1
        w2 = jax.random.normal(k3, (dim_hid, dim_out), jnp.float32) * 0.1
        b2 = jax.random.normal(k4, (dim_out,), jnp.float32) * 0.1
        w1s.append(jnp.zeros((d_in_pad, d_hid_pad), param_dtype)
                   .at[:d, :dim_hid].set(w1.astype(param_dtype)))
        b1s.append(jnp.zeros((1, d_hid_pad), jnp.float32)
                   .at[0, :dim_hid].set(b1))
        w2s.append(jnp.zeros((d_hid_pad, d_out_pad), param_dtype)
                   .at[:dim_hid, :dim_out].set(w2.astype(param_dtype)))
        b2s.append(jnp.zeros((1, d_out_pad), jnp.float32)
                   .at[0, :dim_out].set(b2))

    return {
        "modals": modals,
        "dims_in": dims_in,
        "dim_hid": dim_hid,
        "dim_out": dim_out,
        "w1": jnp.stack(w1s),   # [M, D_in_pad,  D_hid_pad]  param_dtype
        "b1": jnp.stack(b1s),   # [M, 1,         D_hid_pad]  f32
        "w2": jnp.stack(w2s),   # [M, D_hid_pad, D_out_pad]  param_dtype
        "b2": jnp.stack(b2s),   # [M, 1,         D_out_pad]  f32
    }


def encoder_forward(params, inputs, out_dtype=None):
    """Mirrors Encoder_class.forward: dict-in -> dict-out, one fused launch.

    MXU operand dtype = params['w1'].dtype (fixed at init).  Set
    out_dtype=jnp.bfloat16 to also halve output writeback if downstream
    consumers accept bf16; default keeps the module's f32 output semantics.
    """
    modals = params["modals"]
    xs = tuple(inputs[m] for m in modals)
    batches = tuple(int(x.shape[0]) for x in xs)
    if out_dtype is None:
        out_dtype = xs[0].dtype
    d_hid_pad = params["w1"].shape[2]
    th = _pick_hidden_tile(d_hid_pad)
    # v7x has 2 TensorCores: ensure the parallel grid has >= 2 programs.
    min_tiles = 2 if (len(modals) == 1 and max(batches) > SUBLANE_BF16) else 1
    tb = _pick_batch_tile(max(batches), min_tiles=min_tiles)
    outs = _encoder_forward_impl(
        xs, params["w1"], params["b1"], params["w2"], params["b2"],
        dims_in=params["dims_in"], batches=batches, tb=tb, th=th,
        dim_out=params["dim_out"], out_dtype=jnp.dtype(out_dtype))
    return {m: o for m, o in zip(modals, outs)}


# ----------------------------------------------------------------------------
# Pure-JAX reference (same operand dtypes / f32 accumulation as the kernel).
# ----------------------------------------------------------------------------
def _reference_forward(params, inputs):
    ret = {}
    dt = params["w1"].dtype
    dim_hid, dim_out = params["dim_hid"], params["dim_out"]
    for i, m in enumerate(params["modals"]):
        d = params["dims_in"][i]
        x = inputs[m].astype(dt)
        w1 = params["w1"][i, :d, :dim_hid]
        b1 = params["b1"][i, 0, :dim_hid]
        w2 = params["w2"][i, :dim_hid, :dim_out]
        b2 = params["b2"][i, 0, :dim_out]
        h = jnp.dot(x, w1, preferred_element_type=jnp.float32) + b1
        h = jnp.maximum(h, 0.0)
        out = jnp.dot(h.astype(dt), w2, preferred_element_type=jnp.float32) + b2
        ret[m] = out
    return ret


if __name__ == "__main__":
    cfg = {
        "modals": {"audio": 16, "video": 24},
        "parameters": {"dim_hid": 32, "dim_out": 32},
    }
    batch = 8

    key = jax.random.PRNGKey(0)
    key, kp, ka, kv = jax.random.split(key, 4)
    inputs = {
        "audio": jax.random.normal(ka, (batch, int(cfg["modals"]["audio"])), jnp.float32),
        "video": jax.random.normal(kv, (batch, int(cfg["modals"]["video"])), jnp.float32),
    }

    # Verification path: f32-at-rest weights, f32 MXU operands.
    params_f32 = init_encoder_params(cfg, kp, param_dtype=jnp.float32)
    out_f32 = encoder_forward(params_f32, inputs)
    out_f32 = jax.tree_util.tree_map(jax.block_until_ready, out_f32)

    # Production path: bf16-at-rest weights, bf16 MXU operands, f32
    # accumulation; bias-add / ReLU in f32.  Same underlying weights.
    params_bf16 = init_encoder_params(cfg, kp, param_dtype=jnp.bfloat16)
    out_bf16 = encoder_forward(params_bf16, inputs)
    out_bf16 = jax.tree_util.tree_map(jax.block_until_ready, out_bf16)

    ref_f32 = _reference_forward(params_f32, inputs)
    ref_bf16 = _reference_forward(params_bf16, inputs)

    dim_out = int(cfg["parameters"]["dim_out"])
    for m in inputs:
        assert out_f32[m].shape == (batch, dim_out)
        assert out_bf16[m].shape == (batch, dim_out)
        assert jnp.allclose(out_f32[m], ref_f32[m], atol=2e-4, rtol=2e-4), m
        assert jnp.allclose(out_bf16[m], ref_bf16[m], atol=1e-2, rtol=1e-2), m
        assert jnp.allclose(out_bf16[m], ref_f32[m], atol=5e-2, rtol=5e-2), m

    print("KERNEL_OK")
</pallas_src>

<mosaic_0001>
module attributes {stable_mosaic.version = 11 : i64} {
  func.func @_mlp_kernel(%arg0: i32, %arg1: i32, %arg2: i32, %arg3: memref<2xi32, #tpu.memory_space<smem>>, %arg4: memref<1x16x128xf32, #tpu.memory_space<vmem>>, %arg5: memref<1x128x128xf32, #tpu.memory_space<vmem>>, %arg6: memref<1x1x128xf32, #tpu.memory_space<vmem>>, %arg7: memref<1x128x128xf32, #tpu.memory_space<vmem>>, %arg8: memref<1x1x128xf32, #tpu.memory_space<vmem>>, %arg9: memref<1x16x128xf32, #tpu.memory_space<vmem>>, %arg10: memref<16x128xf32, #tpu.memory_space<vmem>>) attributes {dimension_semantics = [#tpu.dimension_semantics<parallel>, #tpu.dimension_semantics<parallel>, #tpu.dimension_semantics<arbitrary>], iteration_bounds = array<i64: 2, 1, 1>, scalar_prefetch = 1 : i64, scratch_operands = 1 : i64, tpu.core_type = #tpu.core_type<tc>, window_params = [{transform_indices = @transform_0, window_bounds = array<i64: 1, 16, 128>}, {transform_indices = @transform_1, window_bounds = array<i64: 1, 128, 128>}, {transform_indices = @transform_2, window_bounds = array<i64: 1, 1, 128>}, {transform_indices = @transform_3, window_bounds = array<i64: 1, 128, 128>}, {transform_indices = @transform_4, window_bounds = array<i64: 1, 1, 128>}, {transform_indices = @transform_5, window_bounds = array<i64: 1, 16, 128>}]} {
    %0 = arith.index_cast %arg0 : i32 to index
    %1 = memref.load %arg3[%0] : memref<2xi32, #tpu.memory_space<smem>>
    %2 = arith.cmpi slt, %arg1, %1 : i32
    %3 = arith.extui %2 : i1 to i32
    %c0_i32 = arith.constant 0 : i32
    %4 = arith.cmpi ne, %3, %c0_i32 : i32
    scf.if %4 {
      %c0_i32_2 = arith.constant 0 : i32
      %10 = arith.cmpi eq, %arg2, %c0_i32_2 : i32
      %11 = arith.extui %10 : i1 to i32
      %c0_i32_3 = arith.constant 0 : i32
      %12 = arith.cmpi ne, %11, %c0_i32_3 : i32
      scf.if %12 {
        %cst_23 = arith.constant 0.000000e+00 : f32
        %33 = vector.broadcast %cst_23 : f32 to vector<16x128xf32>
        %c0_24 = arith.constant 0 : index
        %c0_25 = arith.constant 0 : index
        %34 = vector.load %arg10[%c0_24, %c0_25] : memref<16x128xf32, #tpu.memory_space<vmem>>, vector<16x128xf32>
        tpu.vector_store %arg10[%c0_24, %c0_25], %33 {strides = array<i32>} : memref<16x128xf32, #tpu.memory_space<vmem>>, vector<16x128xf32>,
      } else {
      }
      %c0 = arith.constant 0 : index
      %c0_4 = arith.constant 0 : index
      %c0_5 = arith.constant 0 : index
      %13 = vector.load %arg4[%c0, %c0_4, %c0_5] : memref<1x16x128xf32, #tpu.memory_space<vmem>>, vector<1x16x128xf32>
      %14 = vector.shape_cast %13 : vector<1x16x128xf32> to vector<16x128xf32>
      %c0_6 = arith.constant 0 : index
      %c0_7 = arith.constant 0 : index
      %c0_8 = arith.constant 0 : index
      %15 = vector.load %arg5[%c0_6, %c0_7, %c0_8] : memref<1x128x128xf32, #tpu.memory_space<vmem>>, vector<1x128x128xf32>
      %16 = vector.shape_cast %15 : vector<1x128x128xf32> to vector<128x128xf32>
      %cst = arith.constant dense<0.000000e+00> : vector<16x128xf32>
      %17 = tpu.matmul %14, %16, %cst {dimension_numbers = #tpu.dot_dimension_numbers<[1], [0], [0], [1], [0, 0, 1, 1], [], []>} : vector<16x128xf32>, vector<128x128xf32>, vector<16x128xf32> -> vector<16x128xf32>
      %c0_9 = arith.constant 0 : index
      %c0_10 = arith.constant 0 : index
      %c0_11 = arith.constant 0 : index
      %18 = vector.load %arg6[%c0_9, %c0_10, %c0_11] : memref<1x1x128xf32, #tpu.memory_space<vmem>>, vector<1x1x128xf32>
      %19 = vector.shape_cast %18 : vector<1x1x128xf32> to vector<1x128xf32>
      %20 = vector.broadcast %19 : vector<1x128xf32> to vector<16x128xf32>
      %21 = arith.addf %17, %20 : vector<16x128xf32>
      %cst_12 = arith.constant 0.000000e+00 : f32
      %22 = vector.broadcast %cst_12 : f32 to vector<16x128xf32>
      %23 = arith.maximumf %21, %22 : vector<16x128xf32>
      %c0_13 = arith.constant 0 : index
      %c0_14 = arith.constant 0 : index
      %24 = vector.load %arg10[%c0_13, %c0_14] : memref<16x128xf32, #tpu.memory_space<vmem>>, vector<16x128xf32>
      %c0_15 = arith.constant 0 : index
      %c0_16 = arith.constant 0 : index
      %c0_17 = arith.constant 0 : index
      %25 = vector.load %arg7[%c0_15, %c0_16, %c0_17] : memref<1x128x128xf32, #tpu.memory_space<vmem>>, vector<1x128x128xf32>
      %26 = vector.shape_cast %25 : vector<1x128x128xf32> to vector<128x128xf32>
      %cst_18 = arith.constant dense<0.000000e+00> : vector<16x128xf32>
      %27 = tpu.matmul %23, %26, %cst_18 {dimension_numbers = #tpu.dot_dimension_numbers<[1], [0], [0], [1], [0, 0, 1, 1], [], []>} : vector<16x128xf32>, vector<128x128xf32>, vector<16x128xf32> -> vector<16x128xf32>
      %28 = arith.addf %24, %27 : vector<16x128xf32>
      %c0_19 = arith.constant 0 : index
      %c0_20 = arith.constant 0 : index
      %29 = vector.load %arg10[%c0_19, %c0_20] : memref<16x128xf32, #tpu.memory_space<vmem>>, vector<16x128xf32>
      tpu.vector_store %arg10[%c0_19, %c0_20], %28 {strides = array<i32>} : memref<16x128xf32, #tpu.memory_space<vmem>>, vector<16x128xf32>,
      %c0_i32_21 = arith.constant 0 : i32
      %30 = arith.cmpi eq, %arg2, %c0_i32_21 : i32
      %31 = arith.extui %30 : i1 to i32
      %c0_i32_22 = arith.constant 0 : i32
      %32 = arith.cmpi ne, %31, %c0_i32_22 : i32
      scf.if %32 {
        %c0_23 = arith.constant 0 : index
        %c0_24 = arith.constant 0 : index
        %33 = vector.load %arg10[%c0_23, %c0_24] : memref<16x128xf32, #tpu.memory_space<vmem>>, vector<16x128xf32>
        %c0_25 = arith.constant 0 : index
        %c0_26 = arith.constant 0 : index
        %c0_27 = arith.constant 0 : index
        %34 = vector.load %arg8[%c0_25, %c0_26, %c0_27] : memref<1x1x128xf32, #tpu.memory_space<vmem>>, vector<1x1x128xf32>
        %35 = vector.shape_cast %34 : vector<1x1x128xf32> to vector<1x128xf32>
        %36 = vector.broadcast %35 : vector<1x128xf32> to vector<16x128xf32>
        %37 = arith.addf %33, %36 : vector<16x128xf32>
        %c0_28 = arith.constant 0 : index
        %c0_29 = arith.constant 0 : index
        %c0_30 = arith.constant 0 : index
        %38 = vector.load %arg9[%c0_28, %c0_29, %c0_30] : memref<1x16x128xf32, #tpu.memory_space<vmem>>, vector<1x16x128xf32>
        %39 = vector.shape_cast %38 : vector<1x16x128xf32> to vector<16x128xf32>
        %40 = vector.shape_cast %37 : vector<16x128xf32> to vector<1x16x128xf32>
        tpu.vector_store %arg9[%c0_28, %c0_29, %c0_30], %40 {strides = array<i32>} : memref<1x16x128xf32, #tpu.memory_space<vmem>>, vector<1x16x128xf32>,
      } else {
      }
    } else {
    }
    %true = arith.constant true
    %5 = arith.xori %2, %true : i1
    %c0_i32_0 = arith.constant 0 : i32
    %6 = arith.cmpi eq, %arg2, %c0_i32_0 : i32
    %7 = arith.andi %5, %6 : i1
    %8 = arith.extui %7 : i1 to i32
    %c0_i32_1 = arith.constant 0 : i32
    %9 = arith.cmpi ne, %8, %c0_i32_1 : i32
    scf.if %9 {
      %cst = arith.constant 0.000000e+00 : f32
      %10 = vector.broadcast %cst : f32 to vector<1x16x128xf32>
      %c0 = arith.constant 0 : index
      %c0_2 = arith.constant 0 : index
      %c0_3 = arith.constant 0 : index
      %11 = vector.load %arg9[%c0, %c0_2, %c0_3] : memref<1x16x128xf32, #tpu.memory_space<vmem>>, vector<1x16x128xf32>
      tpu.vector_store %arg9[%c0, %c0_2, %c0_3], %10 {strides = array<i32>} : memref<1x16x128xf32, #tpu.memory_space<vmem>>, vector<1x16x128xf32>,
    } else {
    }
    return
  }
  func.func @transform_0(%arg0: i32, %arg1: i32, %arg2: i32, %arg3: memref<2xi32, #tpu.memory_space<smem>>) -> (i32, i32, i32) {
    %0 = arith.index_cast %arg0 : i32 to index
    %1 = memref.load %arg3[%0] : memref<2xi32, #tpu.memory_space<smem>>
    %c1_i32 = arith.constant 1 : i32
    %2 = arith.subi %1, %c1_i32 : i32
    %3 = arith.minsi %arg1, %2 : i32
    %c0_i32 = arith.constant 0 : i32
    %c0_i32_0 = arith.constant 0 : i32
    return %arg0, %3, %c0_i32 : i32, i32, i32
  }
  func.func @transform_1(%arg0: i32, %arg1: i32, %arg2: i32, %arg3: memref<2xi32, #tpu.memory_space<smem>>) -> (i32, i32, i32) {
    %c0_i32 = arith.constant 0 : i32
    %c0_i32_0 = arith.constant 0 : i32
    return %arg0, %c0_i32, %arg2 : i32, i32, i32
  }
  func.func @transform_2(%arg0: i32, %arg1: i32, %arg2: i32, %arg3: memref<2xi32, #tpu.memory_space<smem>>) -> (i32, i32, i32) {
    %c0_i32 = arith.constant 0 : i32
    %c0_i32_0 = arith.constant 0 : i32
    return %arg0, %c0_i32, %arg2 : i32, i32, i32
  }
  func.func @transform_3(%arg0: i32, %arg1: i32, %arg2: i32, %arg3: memref<2xi32, #tpu.memory_space<smem>>) -> (i32, i32, i32) {
    %c0_i32 = arith.constant 0 : i32
    %c0_i32_0 = arith.constant 0 : i32
    return %arg0, %arg2, %c0_i32 : i32, i32, i32
  }
  func.func @transform_4(%arg0: i32, %arg1: i32, %arg2: i32, %arg3: memref<2xi32, #tpu.memory_space<smem>>) -> (i32, i32, i32) {
    %c0_i32 = arith.constant 0 : i32
    %c0_i32_0 = arith.constant 0 : i32
    %c0_i32_1 = arith.constant 0 : i32
    return %arg0, %c0_i32, %c0_i32_0 : i32, i32, i32
  }
  func.func @transform_5(%arg0: i32, %arg1: i32, %arg2: i32, %arg3: memref<2xi32, #tpu.memory_space<smem>>) -> (i32, i32, i32) {
    %c0_i32 = arith.constant 0 : i32
    %c0_i32_0 = arith.constant 0 : i32
    return %arg0, %arg1, %c0_i32 : i32, i32, i32
  }
}

</mosaic_0001>

<llo_original>
// kernel: _encoder_forward_impl.1
$region0: #{_encoder_forward_impl.1}
  #allocation0 [shape = 'u32[]', space=smem, size = 0x4, offset = 0x4, fixed_abs, tag = 'smem constant byte address 0x4 - core index']
  #allocation1 [shape = 'u32[72,128]{1,0:T(1,128)}', space=vmem, size = 0x9000, scoped, tag = 'internal scratch']
  #allocation2 [shape = 'f32[16,128]{1,0:T(8,128)}', space=vmem, size = 0x2000, scoped, tag = 'scratch operand']
  #allocation3 [shape = 's32[1]{0}', space=sflag, size = 0x4, scoped, tag = 'scoped memory for _encoder_forward_impl.1']
  #allocation4 [shape = 'u8[512]{0}', space=smem, size = 0x200, scoped, tag = 'prefetched SMEM operand 0']
  %s0 = inlined_call_operand.vmem [shape: s32[2], index: 0, kind: input, shape index: {}]
  %s1 = inlined_call_operand.vmem [shape: f32[2,16,128], index: 1, kind: input, shape index: {}]
  %s2 = inlined_call_operand.hbm [shape: f32[2,128,128], index: 2, kind: input, shape index: {}]
  %s3 = inlined_call_operand.vmem [shape: f32[2,1,128], index: 3, kind: input, shape index: {}]
  %s4 = inlined_call_operand.hbm [shape: f32[2,128,128], index: 4, kind: input, shape index: {}]
  %s5 = inlined_call_operand.vmem [shape: f32[2,1,128], index: 5, kind: input, shape index: {}]
  %s6 = inlined_call_operand.vmem [shape: f32[2,16,128], index: 6, kind: output, shape index: {}]
  %s7 = sld [smem:[#allocation0]]
  $region77: #{_encoder_forward_impl.1} parent=0
    _
  %s9 = ssub.s32 1, %s7
  %s10 = scalar_select 0, %s9, %s7
  %s12 = sshll.u32 %s0, 4
  %s13 = int_to_ptr.vmem [resolvable:$true] %s12
  %15 = dma.vmem_to_smem %s13, 16, [#allocation4], [#allocation3]
  %17 = dma.done [#allocation3], 16
  %18 = sfence
  $region1: #{_encoder_forward_impl.1} parent=0
    #allocation5 [shape = 'u8[131072]{0}', space=vmem, size = 0x20000, scoped, tag = 'input window, operand 2']
    #allocation6 [shape = 's32[2]{0}', space=sflag, size = 0x8, scoped, tag = 'scoped memory for _encoder_forward_impl.1']
    #allocation7 [shape = 'u8[131072]{0}', space=vmem, size = 0x20000, scoped, tag = 'input window, operand 4']
    #allocation8 [shape = 's32[2]{0}', space=sflag, size = 0x8, scoped, tag = 'scoped memory for _encoder_forward_impl.1']
    %19 = vsyncpa [#allocation6], 0
    %s20 = scalar_lea.sflag [#allocation6], 1
    %21 = vsyncpa %s20, 0
    %22 = vsyncpa [#allocation8], 0
    %s23 = scalar_lea.sflag [#allocation8], 1
    %24 = vsyncpa %s23, 0
    loop: start=0, step=1, limit=4
    $region2: #{_encoder_forward_impl.1} parent=1 // loop_pre_header
      _
    $region3: #{_encoder_forward_impl.1} parent=1 // loop_header
      %s26 = sphi 0, %s30
      %p27 = scmp.ge.s32.totalorder %s26, 4
      %s33 = sphi 0, %s52
      %s34 = sphi 0, %s48
      %s35 = sphi 0, %s44
      %s36 = sphi 0, %s33
      %s37 = sphi 0, %s34
      %s38 = sphi 0, %s35
      %s39 = sphi 0, %s36
      %s40 = sphi 0, %s37
      %s41 = sphi 0, %s38
      %s65 = sphi 0, %s67
      %s68 = sphi 0, %s65
      %s69 = sphi 0, %s68
      %s85 = sphi 0, %s69
      %s93 = sphi 0, %s95
      %s96 = sphi 0, %s93
      %s97 = sphi 0, %s96
      %s113 = sphi 0, %s97
      %s121 = sphi 0, %s123
      %s124 = sphi 0, %s121
      %s125 = sphi 0, %s124
      %s141 = sphi 0, %s125
      %s149 = sphi 0, %s151
      %s152 = sphi 0, %s149
      %s153 = sphi 0, %s152
      %s169 = sphi 0, %s153
      %s175 = sphi 0, %s177
      %s178 = sphi 0, %s175
      %s179 = sphi 0, %s178
      %s195 = sphi 0, %s179
      %s203 = sphi 0, %s205
      %s206 = sphi 0, %s203
      %s207 = sphi 0, %s206
      %s223 = sphi 0, %s207
    $region4: #{_encoder_forward_impl.1} parent=1 // loop_header_branch
      %29 = sbr.rel (%p27) target = $region8
    $region5: #{_encoder_forward_impl.1} parent=1 // loop_body
      %s31 = ssub.s32 %s26, 1
      %s32 = ssub.s32 %s26, 2
      %s42 = sadd.s32 1, %s35
      %p43 = scmp.ge.s32.totalorder %s42, 1
      %s44 = scalar_select %p43, 0, %s42
      %s45 = sadd.s32 1, %s34
      %s46 = scalar_select %p43, %s45, %s34
      %p47 = scmp.ge.s32.totalorder %s46, 1
      %s48 = scalar_select %p47, 0, %s46
      %s49 = sadd.s32 1, %s33
      %s50 = scalar_select %p47, %s49, %s33
      %p51 = scmp.ge.s32.totalorder %s50, 2
      %s52 = scalar_select %p51, 0, %s50
      %s53 = sld [smem:[#allocation4 + %s33]]
      %s54 = ssub.s32 %s53, 1
      %p55 = scmp.lt.s32.totalorder %s34, %s54
      %s56 = scalar_select %p55, %s34, %s54
      %s57 = sld [smem:[#allocation4 + %s52]]
      %s58 = ssub.s32 %s57, 1
      %p59 = scmp.lt.s32.totalorder %s48, %s58
      %s60 = scalar_select %p59, %s48, %s58
      %s61 = ssub.s32 %s33, %s52
      %s62 = ssub.s32 %s56, %s60
      %s63 = sor.u32 %s61, %s62
      %p64 = scmp.eq.s32.totalorder %s63, 0
      %s66 = sadd.s32 %s65, 1
      %s67 = scalar_select %p64, %s65, %s66
      %p70 = pneg %p64
      %p71 = scmp.eq.s32.totalorder %s26, 1
      %p72 = por %p70, %p71
      %p73 = scmp.ne.s32.totalorder %s65, %s68
      %p74 = scmp.eq.s32.totalorder %s26, 0
      %p75 = por %p73, %p74
      %p76 = scmp.ne.s32.totalorder %s65, %s68
      %p77 = scmp.eq.s32.totalorder %s31, 1
      %p78 = por %p76, %p77
      %p79 = scmp.ne.s32.totalorder %s68, %s69
      %p80 = scmp.eq.s32.totalorder %s31, 0
      %p81 = por %p79, %p80
      %p82 = scmp.ne.s32.totalorder %s68, %s69
      %p83 = scmp.eq.s32.totalorder %s32, 1
      %p84 = por %p82, %p83
      %p86 = scmp.ne.s32.totalorder %s69, %s85
      %p87 = scmp.eq.s32.totalorder %s32, 0
      %p88 = por %p86, %p87
      %s89 = ssub.s32 %s33, %s52
      %s90 = ssub.s32 %s35, %s44
      %s91 = sor.u32 %s89, %s90
      %p92 = scmp.eq.s32.totalorder %s91, 0
      %s94 = sadd.s32 %s93, 1
      %s95 = scalar_select %p92, %s93, %s94
      %p98 = pneg %p92
      %p99 = scmp.eq.s32.totalorder %s26, 1
      %p100 = por %p98, %p99
      %p101 = scmp.ne.s32.totalorder %s93, %s96
      %p102 = scmp.eq.s32.totalorder %s26, 0
      %p103 = por %p101, %p102
      %p104 = scmp.ne.s32.totalorder %s93, %s96
      %p105 = scmp.eq.s32.totalorder %s31, 1
      %p106 = por %p104, %p105
      %p107 = scmp.ne.s32.totalorder %s96, %s97
      %p108 = scmp.eq.s32.totalorder %s31, 0
      %p109 = por %p107, %p108
      %p110 = scmp.ne.s32.totalorder %s96, %s97
      %p111 = scmp.eq.s32.totalorder %s32, 1
      %p112 = por %p110, %p111
      %p114 = scmp.ne.s32.totalorder %s97, %s113
      %p115 = scmp.eq.s32.totalorder %s32, 0
      %p116 = por %p114, %p115
      %s117 = ssub.s32 %s33, %s52
      %s118 = ssub.s32 %s35, %s44
      %s119 = sor.u32 %s117, %s118
      %p120 = scmp.eq.s32.totalorder %s119, 0
      %s122 = sadd.s32 %s121, 1
      %s123 = scalar_select %p120, %s121, %s122
      %p126 = pneg %p120
      %p127 = scmp.eq.s32.totalorder %s26, 1
      %p128 = por %p126, %p127
      %p129 = scmp.ne.s32.totalorder %s121, %s124
      %p130 = scmp.eq.s32.totalorder %s26, 0
      %p131 = por %p129, %p130
      %p132 = scmp.ne.s32.totalorder %s121, %s124
      %p133 = scmp.eq.s32.totalorder %s31, 1
      %p134 = por %p132, %p133
      %p135 = scmp.ne.s32.totalorder %s124, %s125
      %p136 = scmp.eq.s32.totalorder %s31, 0
      %p137 = por %p135, %p136
      %p138 = scmp.ne.s32.totalorder %s124, %s125
      %p139 = scmp.eq.s32.totalorder %s32, 1
      %p140 = por %p138, %p139
      %p142 = scmp.ne.s32.totalorder %s125, %s141
      %p143 = scmp.eq.s32.totalorder %s32, 0
      %p144 = por %p142, %p143
      %s145 = ssub.s32 %s33, %s52
      %s146 = ssub.s32 %s35, %s44
      %s147 = sor.u32 %s145, %s146
      %p148 = scmp.eq.s32.totalorder %s147, 0
      %s150 = sadd.s32 %s149, 1
      %s151 = scalar_select %p148, %s149, %s150
      %p154 = pneg %p148
      %p155 = scmp.eq.s32.totalorder %s26, 1
      %p156 = por %p154, %p155
      %p157 = scmp.ne.s32.totalorder %s149, %s152
      %p158 = scmp.eq.s32.totalorder %s26, 0
      %p159 = por %p157, %p158
      %p160 = scmp.ne.s32.totalorder %s149, %s152
      %p161 = scmp.eq.s32.totalorder %s31, 1
      %p162 = por %p160, %p161
      %p163 = scmp.ne.s32.totalorder %s152, %s153
      %p164 = scmp.eq.s32.totalorder %s31, 0
      %p165 = por %p163, %p164
      %p166 = scmp.ne.s32.totalorder %s152, %s153
      %p167 = scmp.eq.s32.totalorder %s32, 1
      %p168 = por %p166, %p167
      %p170 = scmp.ne.s32.totalorder %s153, %s169
      %p171 = scmp.eq.s32.totalorder %s32, 0
      %p172 = por %p170, %p171
      %s173 = ssub.s32 %s33, %s52
      %p174 = scmp.eq.s32.totalorder %s173, 0
      %s176 = sadd.s32 %s175, 1
      %s177 = scalar_select %p174, %s175, %s176
      %p180 = pneg %p174
      %p181 = scmp.eq.s32.totalorder %s26, 1
      %p182 = por %p180, %p181
      %p183 = scmp.ne.s32.totalorder %s175, %s178
      %p184 = scmp.eq.s32.totalorder %s26, 0
      %p185 = por %p183, %p184
      %p186 = scmp.ne.s32.totalorder %s175, %s178
      %p187 = scmp.eq.s32.totalorder %s31, 1
      %p188 = por %p186, %p187
      %p189 = scmp.ne.s32.totalorder %s178, %s179
      %p190 = scmp.eq.s32.totalorder %s31, 0
      %p191 = por %p189, %p190
      %p192 = scmp.ne.s32.totalorder %s178, %s179
      %p193 = scmp.eq.s32.totalorder %s32, 1
      %p194 = por %p192, %p193
      %p196 = scmp.ne.s32.totalorder %s179, %s195
      %p197 = scmp.eq.s32.totalorder %s32, 0
      %p198 = por %p196, %p197
      %s199 = ssub.s32 %s33, %s52
      %s200 = ssub.s32 %s34, %s48
      %s201 = sor.u32 %s199, %s200
      %p202 = scmp.eq.s32.totalorder %s201, 0
      %s204 = sadd.s32 %s203, 1
      %s205 = scalar_select %p202, %s203, %s204
      %p208 = pneg %p202
      %p209 = scmp.eq.s32.totalorder %s26, 1
      %p210 = por %p208, %p209
      %p211 = scmp.ne.s32.totalorder %s203, %s206
      %p212 = scmp.eq.s32.totalorder %s26, 0
      %p213 = por %p211, %p212
      %p214 = scmp.ne.s32.totalorder %s203, %s206
      %p215 = scmp.eq.s32.totalorder %s31, 1
      %p216 = por %p214, %p215
      %p217 = scmp.ne.s32.totalorder %s206, %s207
      %p218 = scmp.eq.s32.totalorder %s31, 0
      %p219 = por %p217, %p218
      %p220 = scmp.ne.s32.totalorder %s206, %s207
      %p221 = scmp.eq.s32.totalorder %s32, 1
      %p222 = por %p220, %p221
      %p224 = scmp.ne.s32.totalorder %s207, %s223
      %p225 = scmp.eq.s32.totalorder %s32, 0
      %p226 = por %p224, %p225
      %p227 = scmp.le.s32.totalorder 1, %s26
      %p228 = scmp.lt.s32.totalorder %s26, 3
      %p229 = pnand %p227, %p228
      %p230 = pneg %p229
      // Predicated region
      $region9: #{_encoder_forward_impl.1} parent=5 // pred_check
        _
      $region10: #{_encoder_forward_impl.1} parent=5 // pred_check_branch
        %232 = sbr.rel (%p229) target = $region12
      $region11: #{_encoder_forward_impl.1} parent=5 // pred_region
        %s233 = ssub.s32 %s26, 1
      $region12: #{_encoder_forward_impl.1} parent=5 // pred_fallthru
        _
      %p234 = scmp.lt.s32.totalorder %s26, 2
      // Predicated region
      $region13: #{_encoder_forward_impl.1} parent=5 // pred_check
        %p235 = pneg %p234
      $region14: #{_encoder_forward_impl.1} parent=5 // pred_check_branch
        %237 = sbr.rel (%p235) target = $region16
      $region15: #{_encoder_forward_impl.1} parent=5 // pred_region
        // Predicated region
        $region17: #{_encoder_forward_impl.1} parent=15 // pred_check
          %p238 = pneg %p75
        $region18: #{_encoder_forward_impl.1} parent=15 // pred_check_branch
          %240 = sbr.rel (%p238) target = $region20
        $region19: #{_encoder_forward_impl.1} parent=15 // pred_region
          %s241 = sld [smem:[#allocation4 + %s33]]
          %s242 = ssub.s32 %s241, 1
          %p243 = scmp.lt.s32.totalorder %s34, %s242
          %s244 = scalar_select %p243, %s34, %s242
          %s245 = smul.u32 2, %s244
          %p246 = scmp.lt.s32.totalorder %s33, 1
          %s247 = scalar_select %p246, %s33, 1
          %p248 = scmp.lt.s32.totalorder %s245, 1
          %s249 = scalar_select %p248, %s245, 1
          %s250 = smul.addr %s247, 2
          %s251 = sadd.s32 %s249, %s250
          %s252 = smul.addr %s251, 8
          %s253 = scalar_lea.vmem %s1, %s252
          %s254 = sld [smem:[#allocation4 + %s33]]
          %s255 = ssub.s32 %s254, 1
          %p256 = scmp.lt.s32.totalorder %s34, %s255
          %s257 = scalar_select %p256, %s34, %s255
          %s258 = smul.u32 2, %s257
        $region20: #{_encoder_forward_impl.1} parent=15 // pred_fallthru
          _
        // Predicated region
        $region21: #{_encoder_forward_impl.1} parent=15 // pred_check
          %p259 = pneg %p103
        $region22: #{_encoder_forward_impl.1} parent=15 // pred_check_branch
          %261 = sbr.rel (%p259) target = $region24
        $region23: #{_encoder_forward_impl.1} parent=15 // pred_region
          %s262 = sand.u32 %s93, 1
          %s263 = scalar_lea.sflag [#allocation6], %s262
          %s264 = sand.u32 %s93, 1
          %s265 = smul.addr %s264, 128
          %s266 = scalar_lea.vmem [#allocation5], %s265
          %268 = vsyncadd %s263, 0
          %s269 = smul.addr %s33, 16
          %s270 = sadd.s32 %s35, %s269
          %s271 = smul.addr %s270, 8
          %s272 = scalar_lea.hbm %s2, %s271
          %s273 = sshll.u32 %s272, 4
          %s274 = int_to_ptr.hbm [resolvable:$true] %s273
          %s275 = sshll.u32 %s266, 4
          %s276 = int_to_ptr.vmem [resolvable:$true] %s275
          %281 = dma.hbm_to_vmem [thread:$0]  %s274, 2048, %s276, %s263, 128, 128, 8
        $region24: #{_encoder_forward_impl.1} parent=15 // pred_fallthru
          _
        // Predicated region
        $region25: #{_encoder_forward_impl.1} parent=15 // pred_check
          %p282 = pneg %p131
        $region26: #{_encoder_forward_impl.1} parent=15 // pred_check_branch
          %284 = sbr.rel (%p282) target = $region28
        $region27: #{_encoder_forward_impl.1} parent=15 // pred_region
          %p285 = scmp.lt.s32.totalorder %s33, 1
          %s286 = scalar_select %p285, %s33, 1
          %p287 = scmp.lt.s32.totalorder %s35, 0
          %s288 = scalar_select %p287, %s35, 0
          %s289 = sadd.s32 %s288, %s286
          %s290 = scalar_lea.vmem %s3, %s289
        $region28: #{_encoder_forward_impl.1} parent=15 // pred_fallthru
          _
        // Predicated region
        $region29: #{_encoder_forward_impl.1} parent=15 // pred_check
          %p291 = pneg %p159
        $region30: #{_encoder_forward_impl.1} parent=15 // pred_check_branch
          %293 = sbr.rel (%p291) target = $region32
        $region31: #{_encoder_forward_impl.1} parent=15 // pred_region
          %s294 = sand.u32 %s149, 1
          %s295 = scalar_lea.sflag [#allocation8], %s294
          %s296 = sand.u32 %s149, 1
          %s297 = smul.addr %s296, 128
          %s298 = scalar_lea.vmem [#allocation7], %s297
          %s299 = smul.u32 16, %s35
          %301 = vsyncadd %s295, 0
          %s302 = smul.addr %s33, 16
          %s303 = sadd.s32 %s299, %s302
          %s304 = smul.addr %s303, 8
          %s305 = scalar_lea.hbm %s4, %s304
          %s306 = sshll.u32 %s305, 4
          %s307 = int_to_ptr.hbm [resolvable:$true] %s306
          %s308 = sshll.u32 %s298, 4
          %s309 = int_to_ptr.vmem [resolvable:$true] %s308
          %314 = dma.hbm_to_vmem [thread:$0]  %s307, 2048, %s309, %s295, 128, 128, 8
        $region32: #{_encoder_forward_impl.1} parent=15 // pred_fallthru
          _
        // Predicated region
        $region33: #{_encoder_forward_impl.1} parent=15 // pred_check
          %p315 = pneg %p185
        $region34: #{_encoder_forward_impl.1} parent=15 // pred_check_branch
          %317 = sbr.rel (%p315) target = $region36
        $region35: #{_encoder_forward_impl.1} parent=15 // pred_region
          %p318 = scmp.lt.s32.totalorder %s33, 1
          %s319 = scalar_select %p318, %s33, 1
          %s320 = scalar_lea.vmem %s5, %s319
        $region36: #{_encoder_forward_impl.1} parent=15 // pred_fallthru
          _
      $region16: #{_encoder_forward_impl.1} parent=5 // pred_fallthru
        _
      %p321 = scmp.le.s32.totalorder 1, %s26
      %p322 = scmp.lt.s32.totalorder %s26, 3
      %p323 = pnand %p321, %p322
      %p324 = pneg %p323
      // Predicated region
      $region37: #{_encoder_forward_impl.1} parent=5 // pred_check
        _
      $region38: #{_encoder_forward_impl.1} parent=5 // pred_check_branch
        %326 = sbr.rel (%p323) target = $region40
      $region39: #{_encoder_forward_impl.1} parent=5 // pred_region
        %s327 = ssub.s32 %s26, 1
        %s328 = sand.u32 %s96, 1
        %s329 = scalar_lea.sflag [#allocation6], %s328
        %s330 = sand.u32 %s96, 1
        %s331 = smul.addr %s330, 128
        %s332 = scalar_lea.vmem [#allocation5], %s331
        // Predicated region
        $region41: #{_encoder_forward_impl.1} parent=39 // pred_check
          %p333 = pneg %p109
        $region42: #{_encoder_forward_impl.1} parent=39 // pred_check_branch
          %335 = sbr.rel (%p333) target = $region44
        $region43: #{_encoder_forward_impl.1} parent=39 // pred_region
          %337 = dma.done %s329, 2048
        $region44: #{_encoder_forward_impl.1} parent=39 // pred_fallthru
          _
        %s338 = sand.u32 %s152, 1
        %s339 = scalar_lea.sflag [#allocation8], %s338
        %s340 = sand.u32 %s152, 1
        %s341 = smul.addr %s340, 128
        %s342 = scalar_lea.vmem [#allocation7], %s341
        // Predicated region
        $region45: #{_encoder_forward_impl.1} parent=39 // pred_check
          %p343 = pneg %p165
        $region46: #{_encoder_forward_impl.1} parent=39 // pred_check_branch
          %345 = sbr.rel (%p343) target = $region48
        $region47: #{_encoder_forward_impl.1} parent=39 // pred_region
          %347 = dma.done %s339, 2048
        $region48: #{_encoder_forward_impl.1} parent=39 // pred_fallthru
          _
        %s348 = sld [smem:[#allocation4 + %s36]]
        %s349 = ssub.s32 %s348, 1
        %p350 = scmp.lt.s32.totalorder %s37, %s349
        %s351 = scalar_select %p350, %s37, %s349
        %s352 = smul.u32 2, %s351
        %p353 = scmp.lt.s32.totalorder %s36, 1
        %s354 = scalar_select %p353, %s36, 1
        %p355 = scmp.lt.s32.totalorder %s352, 1
        %s356 = scalar_select %p355, %s352, 1
        %s357 = smul.addr %s354, 2
        %s358 = sadd.s32 %s356, %s357
        %s359 = smul.addr %s358, 8
        %s360 = scalar_lea.vmem %s1, %s359
        %p361 = pneg %p81
        %p362 = pneg %p78
        %s363 = sand.u32 %s96, 1
        %s364 = scalar_lea.sflag [#allocation6], %s363
        %s365 = sand.u32 %s96, 1
        %s366 = smul.addr %s365, 128
        %s367 = scalar_lea.vmem [#allocation5], %s366
        %p368 = pneg %p109
        %p369 = pneg %p106
        %p370 = scmp.lt.s32.totalorder %s36, 1
        %s371 = scalar_select %p370, %s36, 1
        %p372 = scmp.lt.s32.totalorder %s38, 0
        %s373 = scalar_select %p372, %s38, 0
        %s374 = sadd.s32 %s373, %s371
        %s375 = scalar_lea.vmem %s3, %s374
        %p376 = pneg %p137
        %p377 = pneg %p134
        %s378 = sand.u32 %s152, 1
        %s379 = scalar_lea.sflag [#allocation8], %s378
        %s380 = sand.u32 %s152, 1
        %s381 = smul.addr %s380, 128
        %s382 = scalar_lea.vmem [#allocation7], %s381
        %p383 = pneg %p165
        %p384 = pneg %p162
        %p385 = scmp.lt.s32.totalorder %s36, 1
        %s386 = scalar_select %p385, %s36, 1
        %s387 = scalar_lea.vmem %s5, %s386
        %p388 = pneg %p191
        %p389 = pneg %p188
        %p390 = pneg %p219
        %p391 = pneg %p216
        %s392 = smul.u32 2, %s37
        %p393 = scmp.lt.s32.totalorder %s36, 1
        %s394 = scalar_select %p393, %s36, 1
        %p395 = scmp.lt.s32.totalorder %s392, 1
        %s396 = scalar_select %p395, %s392, 1
        %s397 = smul.addr %s394, 2
        %s398 = sadd.s32 %s396, %s397
        %s399 = smul.addr %s398, 8
        %s400 = scalar_lea.vmem %s6, %s399
        %s401 = sld [smem:[#allocation4 + %s36]]
        %s402 = ssub.s32 %s401, 1
        %p403 = scmp.lt.s32.totalorder %s37, %s402
        %s404 = scalar_select %p403, %s37, %s402
        %s405 = smul.u32 2, %s404
        %p406 = scmp.lt.s32.totalorder %s36, 1
        %s407 = scalar_select %p406, %s36, 1
        %p408 = scmp.lt.s32.totalorder %s405, 1
        %s409 = scalar_select %p408, %s405, 1
        %s410 = smul.addr %s407, 2
        %s411 = sadd.s32 %s409, %s410
        %s412 = smul.addr %s411, 8
        %s413 = scalar_lea.vmem %s1, %s412
        %s414 = sld [smem:[#allocation4 + %s36]]
        %s415 = ssub.s32 %s414, 1
        %p416 = scmp.lt.s32.totalorder %s37, %s415
        %s417 = scalar_select %p416, %s37, %s415
        %s418 = smul.u32 2, %s417
        %p419 = scmp.lt.s32.totalorder %s36, 1
        %s420 = scalar_select %p419, %s36, 1
        %p421 = scmp.lt.s32.totalorder %s38, 0
        %s422 = scalar_select %p421, %s38, 0
        %s423 = sadd.s32 %s422, %s420
        %s424 = scalar_lea.vmem %s3, %s423
        %s425 = smul.u32 16, %s38
        %p426 = scmp.lt.s32.totalorder %s36, 1
        %s427 = scalar_select %p426, %s36, 1
        %s428 = scalar_lea.vmem %s5, %s427
        %s429 = smul.u32 2, %s37
        %p430 = scmp.lt.s32.totalorder %s36, 1
        %s431 = scalar_select %p430, %s36, 1
        %p432 = scmp.lt.s32.totalorder %s429, 1
        %s433 = scalar_select %p432, %s429, 1
        %s434 = smul.addr %s431, 2
        %s435 = sadd.s32 %s433, %s434
        %s436 = smul.addr %s435, 8
        %s437 = scalar_lea.vmem %s6, %s436
        %s438 = smul.u32 2, %s37
        %s439 = sld [smem:[#allocation4 + %s36]]
        %p440 = scmp.lt.s32.totalorder %s37, %s439
        // Predicated region
        $region49: #{_encoder_forward_impl.1} parent=39 // pred_check
          %p441 = pneg %p440
        $region50: #{_encoder_forward_impl.1} parent=39 // pred_check_branch
          %443 = sbr.rel (%p441) target = $region52
        $region51: #{_encoder_forward_impl.1} parent=39 // pred_region
          %p444 = scmp.eq.s32.totalorder %s38, 0
          // Predicated region
          $region53: #{_encoder_forward_impl.1} parent=51 // pred_check
            %p445 = pneg %p444
          $region54: #{_encoder_forward_impl.1} parent=51 // pred_check_branch
            %447 = sbr.rel (%p445) target = $region56
          $region55: #{_encoder_forward_impl.1} parent=51 // pred_region
            %448 = vst [vmem:[#allocation2] sm:$0xff] 0.0
            %449 = vst [vmem:[#allocation2 + $0x8] sm:$0xff] 0.0
          $region56: #{_encoder_forward_impl.1} parent=51 // pred_fallthru
            _
          %v450 = vld [vmem:[%s413] sm:$0xff]
          %v451 = vld [vmem:[%s413 + $0x8] sm:$0xff]
          %v452 = vld [vmem:[%s332] sm:$0xff]
          %v453 = vld [vmem:[%s332 + $0x8] sm:$0xff]
          %v454 = vld [vmem:[%s332 + $0x10] sm:$0xff]
          %v455 = vld [vmem:[%s332 + $0x18] sm:$0xff]
          %v456 = vld [vmem:[%s332 + $0x20] sm:$0xff]
          %v457 = vld [vmem:[%s332 + $0x28] sm:$0xff]
          %v458 = vld [vmem:[%s332 + $0x30] sm:$0xff]
          %v459 = vld [vmem:[%s332 + $0x38] sm:$0xff]
          %v460 = vld [vmem:[%s332 + $0x40] sm:$0xff]
          %v461 = vld [vmem:[%s332 + $0x48] sm:$0xff]
          %v462 = vld [vmem:[%s332 + $0x50] sm:$0xff]
          %v463 = vld [vmem:[%s332 + $0x58] sm:$0xff]
          %v464 = vld [vmem:[%s332 + $0x60] sm:$0xff]
          %v465 = vld [vmem:[%s332 + $0x68] sm:$0xff]
          %v466 = vld [vmem:[%s332 + $0x70] sm:$0xff]
          %v467 = vld [vmem:[%s332 + $0x78] sm:$0xff]
          %v468 = vld [vmem:[%s424] sm:$0x1]
          %v470 = vperm.slane %v468, 0
          %472 = vmatpush.msra.mxu0 %v467
          %473 = vmatpush.msra.mxu0 %v466
          %474 = vmatpush.msra.mxu0 %v465
          %475 = vmatpush.msra.mxu0 %v464
          %476 = vmatpush.msra.mxu0 %v463
          %477 = vmatpush.msra.mxu0 %v462
          %478 = vmatpush.msra.mxu0 %v461
          %479 = vmatpush.msra.mxu0 %v460
          %480 = vmatpush.msra.mxu0 %v459
          %481 = vmatpush.msra.mxu0 %v458
          %482 = vmatpush.msra.mxu0 %v457
          %483 = vmatpush.msra.mxu0 %v456
          %484 = vmatpush.msra.mxu0 %v455
          %485 = vmatpush.msra.mxu0 %v454
          %486 = vmatpush.msra.mxu0 %v453
          %487 = vmatpush.msra.mxu0 %v452
          %488 = vmatmul.f32.gmra.mxu0 %v450
          %v489 = vpop.f32.mrf.mxu0
          %v490 = vadd.f32 %v470, %v489
          %491 = vmatmul.f32.gmra.mxu0 %v451
          %v492 = vpop.f32.mrf.mxu0
          %v493 = vadd.f32 %v470, %v492
          %494 = vdwg.mxu0
          %v495 = vmax.f32 %v490, 0.0
          %v496 = vmax.f32 %v493, 0.0
          %v497 = vld [vmem:[#allocation2] sm:$0xff]
          %v498 = vld [vmem:[#allocation2 + $0x8] sm:$0xff]
          %v499 = vld [vmem:[%s342] sm:$0xff]
          %v500 = vld [vmem:[%s342 + $0x8] sm:$0xff]
          %v501 = vld [vmem:[%s342 + $0x10] sm:$0xff]
          %v502 = vld [vmem:[%s342 + $0x18] sm:$0xff]
          %v503 = vld [vmem:[%s342 + $0x20] sm:$0xff]
          %v504 = vld [vmem:[%s342 + $0x28] sm:$0xff]
          %v505 = vld [vmem:[%s342 + $0x30] sm:$0xff]
          %v506 = vld [vmem:[%s342 + $0x38] sm:$0xff]
          %v507 = vld [vmem:[%s342 + $0x40] sm:$0xff]
          %v508 = vld [vmem:[%s342 + $0x48] sm:$0xff]
          %v509 = vld [vmem:[%s342 + $0x50] sm:$0xff]
          %v510 = vld [vmem:[%s342 + $0x58] sm:$0xff]
          %v511 = vld [vmem:[%s342 + $0x60] sm:$0xff]
          %v512 = vld [vmem:[%s342 + $0x68] sm:$0xff]
          %v513 = vld [vmem:[%s342 + $0x70] sm:$0xff]
          %v514 = vld [vmem:[%s342 + $0x78] sm:$0xff]
          %515 = vmatpush.msra.mxu0 %v514
          %516 = vmatpush.msra.mxu0 %v513
          %517 = vmatpush.msra.mxu0 %v512
          %518 = vmatpush.msra.mxu0 %v511
          %519 = vmatpush.msra.mxu0 %v510
          %520 = vmatpush.msra.mxu0 %v509
          %521 = vmatpush.msra.mxu0 %v508
          %522 = vmatpush.msra.mxu0 %v507
          %523 = vmatpush.msra.mxu0 %v506
          %524 = vmatpush.msra.mxu0 %v505
          %525 = vmatpush.msra.mxu0 %v504
          %526 = vmatpush.msra.mxu0 %v503
          %527 = vmatpush.msra.mxu0 %v502
          %528 = vmatpush.msra.mxu0 %v501
          %529 = vmatpush.msra.mxu0 %v500
          %530 = vmatpush.msra.mxu0 %v499
          %531 = vmatmul.f32.gmra.mxu0 %v495
          %v532 = vpop.f32.mrf.mxu0
          %v533 = vadd.f32 0.0, %v532
          %534 = vmatmul.f32.gmra.mxu0 %v496
          %v535 = vpop.f32.mrf.mxu0
          %v536 = vadd.f32 0.0, %v535
          %537 = vdwg.mxu0
          %v538 = vadd.f32 %v497, %v533
          %v539 = vadd.f32 %v498, %v536
          %540 = vst [vmem:[#allocation2] sm:$0xff] %v538
          %541 = vst [vmem:[#allocation2 + $0x8] sm:$0xff] %v539
          // Predicated region
          $region57: #{_encoder_forward_impl.1} parent=51 // pred_check
            %p542 = pneg %p444
          $region58: #{_encoder_forward_impl.1} parent=51 // pred_check_branch
            %544 = sbr.rel (%p542) target = $region60
          $region59: #{_encoder_forward_impl.1} parent=51 // pred_region
            %v545 = vld [vmem:[#allocation2] sm:$0xff]
            %v546 = vld [vmem:[#allocation2 + $0x8] sm:$0xff]
            %v547 = vld [vmem:[%s428] sm:$0x1]
            %v549 = vperm.slane %v547, 0
            %v551 = vadd.f32 %v545, %v549
            %v552 = vadd.f32 %v546, %v549
            %553 = vst [vmem:[%s437] sm:$0xff] %v551
            %554 = vst [vmem:[%s437 + $0x8] sm:$0xff] %v552
          $region60: #{_encoder_forward_impl.1} parent=51 // pred_fallthru
            _
        $region52: #{_encoder_forward_impl.1} parent=39 // pred_fallthru
          _
        %p555 = scmp.ge.s32.totalorder %s37, %s439
        %p556 = scmp.eq.s32.totalorder %s38, 0
        %p557 = pnand %p555, %p556
        %p558 = pneg %p557
        // Predicated region
        $region61: #{_encoder_forward_impl.1} parent=39 // pred_check
          _
        $region62: #{_encoder_forward_impl.1} parent=39 // pred_check_branch
          %560 = sbr.rel (%p557) target = $region64
        $region63: #{_encoder_forward_impl.1} parent=39 // pred_region
          %561 = vst [vmem:[%s437] sm:$0xff] 0.0
          %562 = vst [vmem:[%s437 + $0x8] sm:$0xff] 0.0
        $region64: #{_encoder_forward_impl.1} parent=39 // pred_fallthru
          _
        %s563 = smul.u32 2, %s37
        %p564 = scmp.lt.s32.totalorder %s36, 1
        %s565 = scalar_select %p564, %s36, 1
        %p566 = scmp.lt.s32.totalorder %s563, 1
        %s567 = scalar_select %p566, %s563, 1
        %s568 = smul.addr %s565, 2
        %s569 = sadd.s32 %s567, %s568
        %s570 = smul.addr %s569, 8
        %s571 = scalar_lea.vmem %s6, %s570
        // Predicated region
        $region65: #{_encoder_forward_impl.1} parent=39 // pred_check
          %p572 = pneg %p216
        $region66: #{_encoder_forward_impl.1} parent=39 // pred_check_branch
          %574 = sbr.rel (%p572) target = $region68
        $region67: #{_encoder_forward_impl.1} parent=39 // pred_region
          %s575 = smul.u32 2, %s37
        $region68: #{_encoder_forward_impl.1} parent=39 // pred_fallthru
          _
      $region40: #{_encoder_forward_impl.1} parent=5 // pred_fallthru
        _
      %p576 = scmp.le.s32.totalorder 2, %s26
      // Predicated region
      $region69: #{_encoder_forward_impl.1} parent=5 // pred_check
        %p577 = pneg %p576
      $region70: #{_encoder_forward_impl.1} parent=5 // pred_check_branch
        %579 = sbr.rel (%p577) target = $region72
      $region71: #{_encoder_forward_impl.1} parent=5 // pred_region
        %s580 = ssub.s32 %s26, 2
        // Predicated region
        $region73: #{_encoder_forward_impl.1} parent=71 // pred_check
          %p581 = pneg %p222
        $region74: #{_encoder_forward_impl.1} parent=71 // pred_check_branch
          %583 = sbr.rel (%p581) target = $region76
        $region75: #{_encoder_forward_impl.1} parent=71 // pred_region
          %s584 = smul.u32 2, %s40
          %p585 = scmp.lt.s32.totalorder %s39, 1
          %s586 = scalar_select %p585, %s39, 1
          %p587 = scmp.lt.s32.totalorder %s584, 1
          %s588 = scalar_select %p587, %s584, 1
          %s589 = smul.addr %s586, 2
          %s590 = sadd.s32 %s588, %s589
          %s591 = smul.addr %s590, 8
          %s592 = scalar_lea.vmem %s6, %s591
        $region76: #{_encoder_forward_impl.1} parent=71 // pred_fallthru
          _
      $region72: #{_encoder_forward_impl.1} parent=5 // pred_fallthru
        _
    $region6: #{_encoder_forward_impl.1} parent=1 // loop_footer
      %s30 = sadd.s32 1, %s26
    $region7: #{_encoder_forward_impl.1} parent=1 // loop_footer_branch
      %25 = sbr.rel target = $region3
    $region8: #{_encoder_forward_impl.1} parent=1 // loop_exit
      _
    %593 = vsyncpa [#allocation6], 1
    %s594 = scalar_lea.sflag [#allocation6], 1
    %595 = vsyncpa %s594, 1
    %596 = vsyncpa [#allocation8], 1
    %s597 = scalar_lea.sflag [#allocation8], 1
    %598 = vsyncpa %s597, 1

</llo_original>
